<compile_context>
chip_gen: v6e
topology: v6e:2x2x1
jax: 0.10.0
libtpu: 0.0.40
codegen_flags: <defaults>
</compile_context>

<pallas_src>
import functools

import jax
import jax.numpy as jnp
from jax.experimental import pallas as pl
from jax.experimental.pallas import tpu as pltpu


# ----------------------------------------------------------------------------
# Kernel bodies
# ----------------------------------------------------------------------------

def _se_compute(x, w1, b1, w2, b2, residual, channels_last):
    """SE math on one VMEM block.

    x: (bt, C, HW) when channels_last=False, (bt, HW, C) when channels_last=True.
    Compute runs in f32 regardless of the HBM dtype (v5e has no bf16 VPU/EUP).
    """
    xf = x.astype(jnp.float32)
    if channels_last:
        hw = xf.shape[-2]
        pooled = jnp.sum(xf, axis=-2) * (1.0 / hw)        # (bt, C), sublane reduce
    else:
        hw = xf.shape[-1]
        pooled = jnp.sum(xf, axis=-1) * (1.0 / hw)        # (bt, C), lane reduce
    h = jnp.dot(pooled, w1, preferred_element_type=jnp.float32) + b1   # (bt, Cr)
    h = jnp.maximum(h, 0.0)
    s = jnp.dot(h, w2, preferred_element_type=jnp.float32) + b2        # (bt, C)
    s = jax.nn.sigmoid(s)
    gate = s[:, None, :] if channels_last else s[:, :, None]
    out = xf * gate
    if residual is not None:
        out = jnp.maximum(out + residual.astype(jnp.float32), 0.0)
    return out


def _se_kernel(x_ref, w1_ref, b1_ref, w2_ref, b2_ref, o_ref, *, channels_last):
    o_ref[...] = _se_compute(
        x_ref[...], w1_ref[...], b1_ref[...], w2_ref[...], b2_ref[...],
        None, channels_last).astype(o_ref.dtype)


def _se_add_relu_kernel(x_ref, r_ref, w1_ref, b1_ref, w2_ref, b2_ref, o_ref, *,
                        channels_last):
    # Fused Attention layer body (config bit set): relu(se(x) + residual).
    o_ref[...] = _se_compute(
        x_ref[...], w1_ref[...], b1_ref[...], w2_ref[...], b2_ref[...],
        r_ref[...], channels_last).astype(o_ref.dtype)


# ----------------------------------------------------------------------------
# Tiling policy (decoupled from physical VMEM)
# ----------------------------------------------------------------------------

_TARGET_BLOCK_BYTES = 2 * 1024 * 1024   # ~2 MiB per stream per grid step
_MIN_STEPS = 4                          # >= 2 grid steps per TC on v7x (2 TCs)


def _pick_batch_tile(n, c, hw, itemsize):
    """Batch tile: blocks ~<= 2 MiB per stream, and enough grid steps to both
    pipeline (hide input/output DMA) and shard across v7x's two TensorCores."""
    bytes_per_image = max(1, c * hw * itemsize)
    bt = max(1, _TARGET_BLOCK_BYTES // bytes_per_image)
    if n >= _MIN_STEPS:
        bt = min(bt, n // _MIN_STEPS)
    elif n >= 2:
        bt = min(bt, n // 2)
    return max(1, min(bt, n))


# ----------------------------------------------------------------------------
# Wrappers
# ----------------------------------------------------------------------------

def se_module(x_nchw, w1, b1, w2, b2, residual=None, batch_tile=None):
    """SE module forward (optionally fused with residual add + ReLU).

    x_nchw:   (N, C, H, W), f32 or bf16 (HBM streams keep this dtype)
    w1:       (Cr, C) fc1 weight (from Conv2d weight (Cr, C, 1, 1))
    b1:       (Cr,)   fc1 bias
    w2:       (C, Cr) fc2 weight
    b2:       (C,)    fc2 bias
    residual: optional (N, C, H, W); if given returns relu(x * s + residual)
              (the Attention.forward per-layer body with the config bit set),
              otherwise returns x * s (plain SEModule.forward).
    """
    N, C, H, W = x_nchw.shape
    Cr = w1.shape[0]
    HW = H * W
    dtype = x_nchw.dtype
    itemsize = jnp.dtype(dtype).itemsize

    # Lane-dense output is the biggest mem-bound lever: put a 128-multiple on
    # the block's last dim whenever possible.
    channels_last = (HW % 128 != 0) and (C % 128 == 0)

    if channels_last:
        # HW is lane-sparse but C is lane-dense -> channels-last block (bt,HW,C).
        # Costs one upstream transpose pass but gives unmasked vector stores.
        x = jnp.transpose(x_nchw, (0, 2, 3, 1)).reshape(N, HW, C)
        r = None
        if residual is not None:
            r = jnp.transpose(residual.astype(dtype), (0, 2, 3, 1)).reshape(N, HW, C)
        block_shape = lambda bt: (bt, HW, C)
    else:
        # Free reshape (merges contiguous trailing dims) -- no transpose, no copy.
        x = x_nchw.reshape(N, C, HW)
        r = None
        if residual is not None:
            r = residual.astype(dtype).reshape(N, C, HW)
        block_shape = lambda bt: (bt, C, HW)

    # Tiny excitation weights: resident in f32 for MLP/sigmoid precision.
    w1_t = w1.T.astype(jnp.float32)            # (C, Cr)
    w2_t = w2.T.astype(jnp.float32)            # (Cr, C)
    b1_2d = b1.reshape(1, Cr).astype(jnp.float32)
    b2_2d = b2.reshape(1, C).astype(jnp.float32)

    bt = batch_tile if batch_tile is not None else _pick_batch_tile(N, C, HW, itemsize)
    grid = (pl.cdiv(N, bt),)   # non-divisor tolerant; boundary block is padded

    img_spec = pl.BlockSpec(block_shape(bt), lambda b: (b, 0, 0))
    weight_specs = [
        pl.BlockSpec((C, Cr), lambda b: (0, 0)),   # w1^T (constant block)
        pl.BlockSpec((1, Cr), lambda b: (0, 0)),   # b1
        pl.BlockSpec((Cr, C), lambda b: (0, 0)),   # w2^T
        pl.BlockSpec((1, C), lambda b: (0, 0)),    # b2
    ]

    if residual is None:
        kernel = functools.partial(_se_kernel, channels_last=channels_last)
        in_specs = [img_spec] + weight_specs
        args = (x, w1_t, b1_2d, w2_t, b2_2d)
    else:
        kernel = functools.partial(_se_add_relu_kernel, channels_last=channels_last)
        in_specs = [img_spec, img_spec] + weight_specs
        args = (x, r, w1_t, b1_2d, w2_t, b2_2d)

    out = pl.pallas_call(
        kernel,
        out_shape=jax.ShapeDtypeStruct(x.shape, dtype),
        grid_spec=pltpu.PrefetchScalarGridSpec(
            num_scalar_prefetch=0,
            grid=grid,
            in_specs=in_specs,
            out_specs=img_spec,
        ),
        compiler_params=pltpu.CompilerParams(
            dimension_semantics=("parallel",),
        ),
    )(*args)

    if channels_last:
        return jnp.transpose(out.reshape(N, H, W, C), (0, 3, 1, 2))
    return out.reshape(N, C, H, W)


def attention_forward(x, layer_fns, config, se_params):
    """Attention.forward: per-layer  x, org = layer(x); optional shared SE;
    residual add; ReLU.  When the config bit is set the SE + add + ReLU body is
    a single fused Pallas pass over HBM (x, org in; out out)."""
    # TODO(synk): the ResNet bottleneck blocks inside Attention.ModuleList are
    # external sub-networks not defined in the spec; they are taken here as
    # user-provided callables rather than translated to Pallas.
    n = len(layer_fns)
    bits = bin(config)[2:]
    assert len(bits) <= n, "the code length is larger than the network length"
    bits = bits.zfill(n)
    w1, b1, w2, b2 = se_params
    for idx, layer in enumerate(layer_fns):
        x, org = layer(x)
        if bits[idx] == "1":
            x = se_module(x, w1, b1, w2, b2, residual=org)   # fused SE + add + ReLU
        else:
            x = jnp.maximum(x + org, 0.0)
    return x


# ----------------------------------------------------------------------------
# Pure-JAX references
# ----------------------------------------------------------------------------

def _se_reference(x, w1, b1, w2, b2):
    x = x.astype(jnp.float32)
    pooled = jnp.mean(x, axis=(2, 3), keepdims=True)                  # (N, C, 1, 1)
    h = jnp.einsum("ncij,oc->noij", pooled, w1) + b1[None, :, None, None]
    h = jnp.maximum(h, 0.0)
    s = jnp.einsum("ncij,oc->noij", h, w2) + b2[None, :, None, None]
    return x * jax.nn.sigmoid(s)


def _attention_reference(x, layer_fns, config, se_params):
    w1, b1, w2, b2 = se_params
    bits = bin(config)[2:].zfill(len(layer_fns))
    for idx, layer in enumerate(layer_fns):
        x, org = layer(x)
        if bits[idx] == "1":
            x = _se_reference(x, w1, b1, w2, b2)
        x = jnp.maximum(x + org, 0.0)
    return x


# ----------------------------------------------------------------------------
# Test
# ----------------------------------------------------------------------------

if __name__ == "__main__":
    key = jax.random.PRNGKey(0)
    # Attention(block_idx=1) -> SEModule(64 * 4 = 256 channels, reduction=16).
    N, C, H, W = 4, 256, 16, 16
    reduction = 16
    Cr = C // reduction

    k_x, k_w1, k_b1, k_w2, k_b2, k_r = jax.random.split(key, 6)
    x = jax.random.normal(k_x, (N, C, H, W), dtype=jnp.float32)
    org = jax.random.normal(k_r, (N, C, H, W), dtype=jnp.float32)
    w1 = jax.random.normal(k_w1, (Cr, C), dtype=jnp.float32) * (1.0 / jnp.sqrt(C))
    b1 = jax.random.normal(k_b1, (Cr,), dtype=jnp.float32) * 0.01
    w2 = jax.random.normal(k_w2, (C, Cr), dtype=jnp.float32) * (1.0 / jnp.sqrt(Cr))
    b2 = jax.random.normal(k_b2, (C,), dtype=jnp.float32) * 0.01

    # 1) Plain SEModule.forward, f32 streams, channels-first lane-dense layout.
    out = se_module(x, w1, b1, w2, b2)
    jax.block_until_ready(out)
    ref = _se_reference(x, w1, b1, w2, b2)
    assert out.shape == x.shape and out.dtype == x.dtype
    assert jnp.allclose(out, ref, atol=1e-4, rtol=1e-4), "SE f32 mismatch"

    # 2) Same, bf16 HBM streams (compute stays f32 inside the kernel).
    x_bf = x.astype(jnp.bfloat16)
    out_bf = se_module(x_bf, w1, b1, w2, b2)
    jax.block_until_ready(out_bf)
    ref_bf = _se_reference(x_bf, w1, b1, w2, b2)
    assert out_bf.dtype == jnp.bfloat16
    assert jnp.allclose(out_bf.astype(jnp.float32), ref_bf, atol=5e-2, rtol=5e-2), \
        "SE bf16 mismatch"

    # 3) Fused SE + residual add + ReLU (Attention layer body, config bit set).
    out_f = se_module(x, w1, b1, w2, b2, residual=org)
    jax.block_until_ready(out_f)
    ref_f = jnp.maximum(ref + org, 0.0)
    assert jnp.allclose(out_f, ref_f, atol=1e-4, rtol=1e-4), "fused SE mismatch"

    # 4) Channels-last layout (HW=7*7=49 not a multiple of 128) with a
    #    non-divisor batch tile (padded boundary block).
    N2, H2, W2 = 5, 7, 7
    k_x2, k_r2 = jax.random.split(jax.random.PRNGKey(1), 2)
    x2 = jax.random.normal(k_x2, (N2, C, H2, W2), dtype=jnp.float32)
    org2 = jax.random.normal(k_r2, (N2, C, H2, W2), dtype=jnp.float32)
    out2 = se_module(x2, w1, b1, w2, b2, residual=org2, batch_tile=2)
    jax.block_until_ready(out2)
    ref2 = jnp.maximum(_se_reference(x2, w1, b1, w2, b2) + org2, 0.0)
    assert jnp.allclose(out2, ref2, atol=1e-4, rtol=1e-4), "channels-last mismatch"

    # 5) Attention.forward-style config loop with stand-in layers.
    layer_fns = [lambda t: (t * 1.1, t), lambda t: (t * 0.9, t)]
    config = 0b10
    out_attn = attention_forward(x, layer_fns, config, (w1, b1, w2, b2))
    jax.block_until_ready(out_attn)
    ref_attn = _attention_reference(x, layer_fns, config, (w1, b1, w2, b2))
    assert jnp.allclose(out_attn, ref_attn, atol=1e-4, rtol=1e-4), "Attention mismatch"

    print("KERNEL_OK")
</pallas_src>

<mosaic_0001>
module attributes {stable_mosaic.version = 11 : i64} {
  func.func @_se_kernel(%arg0: i32, %arg1: memref<1x256x256xf32, #tpu.memory_space<vmem>>, %arg2: memref<256x16xf32, #tpu.memory_space<vmem>>, %arg3: memref<1x16xf32, #tpu.memory_space<vmem>>, %arg4: memref<16x256xf32, #tpu.memory_space<vmem>>, %arg5: memref<1x256xf32, #tpu.memory_space<vmem>>, %arg6: memref<1x256x256xf32, #tpu.memory_space<vmem>>) attributes {dimension_semantics = [#tpu.dimension_semantics<parallel>], iteration_bounds = array<i64: 4>, scalar_prefetch = 0 : i64, scratch_operands = 0 : i64, tpu.core_type = #tpu.core_type<tc>, window_params = [{transform_indices = @transform_0, window_bounds = array<i64: 1, 256, 256>}, {pipeline_mode = #tpu.pipeline_mode<synchronous>, transform_indices = @transform_1, window_bounds = array<i64: 256, 16>}, {pipeline_mode = #tpu.pipeline_mode<synchronous>, transform_indices = @transform_2, window_bounds = array<i64: 1, 16>}, {pipeline_mode = #tpu.pipeline_mode<synchronous>, transform_indices = @transform_3, window_bounds = array<i64: 16, 256>}, {pipeline_mode = #tpu.pipeline_mode<synchronous>, transform_indices = @transform_4, window_bounds = array<i64: 1, 256>}, {transform_indices = @transform_5, window_bounds = array<i64: 1, 256, 256>}]} {
    %c0 = arith.constant 0 : index
    %c0_0 = arith.constant 0 : index
    %c0_1 = arith.constant 0 : index
    %0 = vector.load %arg1[%c0, %c0_0, %c0_1] : memref<1x256x256xf32, #tpu.memory_space<vmem>>, vector<1x256x256xf32>
    %c0_2 = arith.constant 0 : index
    %c0_3 = arith.constant 0 : index
    %1 = vector.load %arg2[%c0_2, %c0_3] : memref<256x16xf32, #tpu.memory_space<vmem>>, vector<256x16xf32>
    %c0_4 = arith.constant 0 : index
    %c0_5 = arith.constant 0 : index
    %2 = vector.load %arg3[%c0_4, %c0_5] : memref<1x16xf32, #tpu.memory_space<vmem>>, vector<1x16xf32>
    %c0_6 = arith.constant 0 : index
    %c0_7 = arith.constant 0 : index
    %3 = vector.load %arg4[%c0_6, %c0_7] : memref<16x256xf32, #tpu.memory_space<vmem>>, vector<16x256xf32>
    %c0_8 = arith.constant 0 : index
    %c0_9 = arith.constant 0 : index
    %4 = vector.load %arg5[%c0_8, %c0_9] : memref<1x256xf32, #tpu.memory_space<vmem>>, vector<1x256xf32>
    %cst = arith.constant dense<0.000000e+00> : vector<1x256xf32>
    %5 = vector.multi_reduction <add>, %0, %cst [2] : vector<1x256x256xf32> to vector<1x256xf32>
    %cst_10 = arith.constant 3.906250e-03 : f32
    %6 = vector.broadcast %cst_10 : f32 to vector<1x256xf32>
    %7 = arith.mulf %5, %6 : vector<1x256xf32>
    %cst_11 = arith.constant dense<0.000000e+00> : vector<1x16xf32>
    %8 = tpu.matmul %7, %1, %cst_11 {dimension_numbers = #tpu.dot_dimension_numbers<[1], [0], [0], [1], [0, 0, 1, 1], [], []>} : vector<1x256xf32>, vector<256x16xf32>, vector<1x16xf32> -> vector<1x16xf32>
    %9 = arith.addf %8, %2 : vector<1x16xf32>
    %cst_12 = arith.constant 0.000000e+00 : f32
    %10 = vector.broadcast %cst_12 : f32 to vector<1x16xf32>
    %11 = arith.maximumf %9, %10 : vector<1x16xf32>
    %cst_13 = arith.constant dense<0.000000e+00> : vector<1x256xf32>
    %12 = tpu.matmul %11, %3, %cst_13 {dimension_numbers = #tpu.dot_dimension_numbers<[1], [0], [0], [1], [0, 0, 1, 1], [], []>} : vector<1x16xf32>, vector<16x256xf32>, vector<1x256xf32> -> vector<1x256xf32>
    %13 = arith.addf %12, %4 : vector<1x256xf32>
    %14 = arith.negf %13 : vector<1x256xf32>
    %15 = math.exp %14 : vector<1x256xf32>
    %cst_14 = arith.constant 1.000000e+00 : f32
    %16 = vector.broadcast %cst_14 : f32 to vector<1x256xf32>
    %17 = arith.addf %16, %15 : vector<1x256xf32>
    %18 = arith.divf %16, %17 : vector<1x256xf32>
    %19 = vector.shape_cast %18 : vector<1x256xf32> to vector<1x256x1xf32>
    %20 = vector.broadcast %19 : vector<1x256x1xf32> to vector<1x256x256xf32>
    %21 = arith.mulf %0, %20 : vector<1x256x256xf32>
    %c0_15 = arith.constant 0 : index
    %c0_16 = arith.constant 0 : index
    %c0_17 = arith.constant 0 : index
    %22 = vector.load %arg6[%c0_15, %c0_16, %c0_17] : memref<1x256x256xf32, #tpu.memory_space<vmem>>, vector<1x256x256xf32>
    tpu.vector_store %arg6[%c0_15, %c0_16, %c0_17], %21 {strides = array<i32>} : memref<1x256x256xf32, #tpu.memory_space<vmem>>, vector<1x256x256xf32>,
    return
  }
  func.func @transform_0(%arg0: i32) -> (i32, i32, i32) {
    %c0_i32 = arith.constant 0 : i32
    %c0_i32_0 = arith.constant 0 : i32
    %c0_i32_1 = arith.constant 0 : i32
    return %arg0, %c0_i32, %c0_i32_0 : i32, i32, i32
  }
  func.func @transform_1(%arg0: i32) -> (i32, i32) {
    %c0_i32 = arith.constant 0 : i32
    %c0_i32_0 = arith.constant 0 : i32
    %c0_i32_1 = arith.constant 0 : i32
    return %c0_i32, %c0_i32_0 : i32, i32
  }
  func.func @transform_2(%arg0: i32) -> (i32, i32) {
    %c0_i32 = arith.constant 0 : i32
    %c0_i32_0 = arith.constant 0 : i32
    %c0_i32_1 = arith.constant 0 : i32
    return %c0_i32, %c0_i32_0 : i32, i32
  }
  func.func @transform_3(%arg0: i32) -> (i32, i32) {
    %c0_i32 = arith.constant 0 : i32
    %c0_i32_0 = arith.constant 0 : i32
    %c0_i32_1 = arith.constant 0 : i32
    return %c0_i32, %c0_i32_0 : i32, i32
  }
  func.func @transform_4(%arg0: i32) -> (i32, i32) {
    %c0_i32 = arith.constant 0 : i32
    %c0_i32_0 = arith.constant 0 : i32
    %c0_i32_1 = arith.constant 0 : i32
    return %c0_i32, %c0_i32_0 : i32, i32
  }
  func.func @transform_5(%arg0: i32) -> (i32, i32, i32) {
    %c0_i32 = arith.constant 0 : i32
    %c0_i32_0 = arith.constant 0 : i32
    %c0_i32_1 = arith.constant 0 : i32
    return %arg0, %c0_i32, %c0_i32_0 : i32, i32, i32
  }
}

</mosaic_0001>

<llo_original>
// kernel: tpu_custom_call.1
$region0: #{tpu_custom_call.1}
  #allocation0 [shape = 'u32[]', space=smem, size = 0x4, offset = 0x4, fixed_abs, tag = 'smem constant byte address 0x4 - core index']
  #allocation1 [shape = 'u32[144,128]{1,0:T(1,128)}', space=vmem, size = 0x12000, scoped, tag = 'internal scratch']
  %s0 = inlined_call_operand.hbm [shape: f32[4,256,256], index: 0, kind: input, shape index: {}]
  %s1 = inlined_call_operand.vmem [shape: f32[256,16], index: 1, kind: input, shape index: {}]
  %s2 = inlined_call_operand.vmem [shape: f32[1,16], index: 2, kind: input, shape index: {}]
  %s3 = inlined_call_operand.vmem [shape: f32[16,256], index: 3, kind: input, shape index: {}]
  %s4 = inlined_call_operand.vmem [shape: f32[1,256], index: 4, kind: input, shape index: {}]
  %s5 = inlined_call_operand.hbm [shape: f32[4,256,256], index: 5, kind: output, shape index: {}]
  %s6 = sld [smem:[#allocation0]]
  $region57: #{tpu_custom_call.1} parent=0
    _
  %s8 = ssub.s32 1, %s6
  %s9 = scalar_select 0, %s8, %s6
  $region1: #{tpu_custom_call.1} parent=0
    #allocation2 [shape = 'u8[524288]{0}', space=vmem, size = 0x80000, scoped, tag = 'input window, operand 0']
    #allocation3 [shape = 's32[2]{0}', space=sflag, size = 0x8, scoped, tag = 'scoped memory for tpu_custom_call.1']
    #allocation4 [shape = 's32[2]{0}', space=sflag, size = 0x8, scoped, tag = 'scoped memory for tpu_custom_call.1']
    #allocation5 [shape = 'u8[524288]{0}', space=vmem, size = 0x80000, scoped, tag = 'output window, operand 0']
    %10 = vsyncpa [#allocation3], 0
    %s11 = scalar_lea.sflag [#allocation3], 1
    %12 = vsyncpa %s11, 0
    %13 = vsyncpa [#allocation4], 0
    %s14 = scalar_lea.sflag [#allocation4], 1
    %15 = vsyncpa %s14, 0
    loop: start=0, step=1, limit=6
    $region2: #{tpu_custom_call.1} parent=1 // loop_pre_header
      _
    $region3: #{tpu_custom_call.1} parent=1 // loop_header
      %s17 = sphi 0, %s21
      %p18 = scmp.ge.s32.totalorder %s17, 6
      %s27 = sphi 0, %s29
      %s30 = sphi 0, %s27
      %s31 = sphi 0, %s30
      %s47 = sphi 0, %s31
      %s51 = sphi 0, %s51
      %s53 = sphi 0, %s51
      %s54 = sphi 0, %s53
      %s68 = sphi 0, %s54
      %s72 = sphi 0, %s72
      %s74 = sphi 0, %s72
      %s75 = sphi 0, %s74
      %s89 = sphi 0, %s75
      %s93 = sphi 0, %s93
      %s95 = sphi 0, %s93
      %s96 = sphi 0, %s95
      %s110 = sphi 0, %s96
      %s114 = sphi 0, %s114
      %s116 = sphi 0, %s114
      %s117 = sphi 0, %s116
      %s131 = sphi 0, %s117
      %s137 = sphi 0, %s139
      %s140 = sphi 0, %s137
      %s141 = sphi 0, %s140
      %s157 = sphi 0, %s141
    $region4: #{tpu_custom_call.1} parent=1 // loop_header_branch
      %20 = sbr.rel (%p18) target = $region8
    $region5: #{tpu_custom_call.1} parent=1 // loop_body
      %s22 = ssub.s32 %s17, 1
      %s23 = ssub.s32 %s17, 2
      %s24 = sadd.s32 %s17, 1
      %s25 = ssub.s32 %s17, %s24
      %p26 = scmp.eq.s32.totalorder %s25, 0
      %s28 = sadd.s32 %s27, 1
      %s29 = scalar_select %p26, %s27, %s28
      %p32 = pneg %p26
      %p33 = scmp.eq.s32.totalorder %s17, 3
      %p34 = por %p32, %p33
      %p35 = scmp.ne.s32.totalorder %s27, %s30
      %p36 = scmp.eq.s32.totalorder %s17, 0
      %p37 = por %p35, %p36
      %p38 = scmp.ne.s32.totalorder %s27, %s30
      %p39 = scmp.eq.s32.totalorder %s22, 3
      %p40 = por %p38, %p39
      %p41 = scmp.ne.s32.totalorder %s30, %s31
      %p42 = scmp.eq.s32.totalorder %s22, 0
      %p43 = por %p41, %p42
      %p44 = scmp.ne.s32.totalorder %s30, %s31
      %p45 = scmp.eq.s32.totalorder %s23, 3
      %p46 = por %p44, %p45
      %p48 = scmp.ne.s32.totalorder %s31, %s47
      %p49 = scmp.eq.s32.totalorder %s23, 0
      %p50 = por %p48, %p49
      %s52 = sadd.s32 %s51, 1
      %p55 = scmp.eq.s32.totalorder %s17, 3
      %p56 = scmp.ne.s32.totalorder %s51, %s53
      %p57 = scmp.eq.s32.totalorder %s17, 0
      %p58 = por %p56, %p57
      %p59 = scmp.ne.s32.totalorder %s51, %s53
      %p60 = scmp.eq.s32.totalorder %s22, 3
      %p61 = por %p59, %p60
      %p62 = scmp.ne.s32.totalorder %s53, %s54
      %p63 = scmp.eq.s32.totalorder %s22, 0
      %p64 = por %p62, %p63
      %p65 = scmp.ne.s32.totalorder %s53, %s54
      %p66 = scmp.eq.s32.totalorder %s23, 3
      %p67 = por %p65, %p66
      %p69 = scmp.ne.s32.totalorder %s54, %s68
      %p70 = scmp.eq.s32.totalorder %s23, 0
      %p71 = por %p69, %p70
      %s73 = sadd.s32 %s72, 1
      %p76 = scmp.eq.s32.totalorder %s17, 3
      %p77 = scmp.ne.s32.totalorder %s72, %s74
      %p78 = scmp.eq.s32.totalorder %s17, 0
      %p79 = por %p77, %p78
      %p80 = scmp.ne.s32.totalorder %s72, %s74
      %p81 = scmp.eq.s32.totalorder %s22, 3
      %p82 = por %p80, %p81
      %p83 = scmp.ne.s32.totalorder %s74, %s75
      %p84 = scmp.eq.s32.totalorder %s22, 0
      %p85 = por %p83, %p84
      %p86 = scmp.ne.s32.totalorder %s74, %s75
      %p87 = scmp.eq.s32.totalorder %s23, 3
      %p88 = por %p86, %p87
      %p90 = scmp.ne.s32.totalorder %s75, %s89
      %p91 = scmp.eq.s32.totalorder %s23, 0
      %p92 = por %p90, %p91
      %s94 = sadd.s32 %s93, 1
      %p97 = scmp.eq.s32.totalorder %s17, 3
      %p98 = scmp.ne.s32.totalorder %s93, %s95
      %p99 = scmp.eq.s32.totalorder %s17, 0
      %p100 = por %p98, %p99
      %p101 = scmp.ne.s32.totalorder %s93, %s95
      %p102 = scmp.eq.s32.totalorder %s22, 3
      %p103 = por %p101, %p102
      %p104 = scmp.ne.s32.totalorder %s95, %s96
      %p105 = scmp.eq.s32.totalorder %s22, 0
      %p106 = por %p104, %p105
      %p107 = scmp.ne.s32.totalorder %s95, %s96
      %p108 = scmp.eq.s32.totalorder %s23, 3
      %p109 = por %p107, %p108
      %p111 = scmp.ne.s32.totalorder %s96, %s110
      %p112 = scmp.eq.s32.totalorder %s23, 0
      %p113 = por %p111, %p112
      %s115 = sadd.s32 %s114, 1
      %p118 = scmp.eq.s32.totalorder %s17, 3
      %p119 = scmp.ne.s32.totalorder %s114, %s116
      %p120 = scmp.eq.s32.totalorder %s17, 0
      %p121 = por %p119, %p120
      %p122 = scmp.ne.s32.totalorder %s114, %s116
      %p123 = scmp.eq.s32.totalorder %s22, 3
      %p124 = por %p122, %p123
      %p125 = scmp.ne.s32.totalorder %s116, %s117
      %p126 = scmp.eq.s32.totalorder %s22, 0
      %p127 = por %p125, %p126
      %p128 = scmp.ne.s32.totalorder %s116, %s117
      %p129 = scmp.eq.s32.totalorder %s23, 3
      %p130 = por %p128, %p129
      %p132 = scmp.ne.s32.totalorder %s117, %s131
      %p133 = scmp.eq.s32.totalorder %s23, 0
      %p134 = por %p132, %p133
      %s135 = ssub.s32 %s17, %s24
      %p136 = scmp.eq.s32.totalorder %s135, 0
      %s138 = sadd.s32 %s137, 1
      %s139 = scalar_select %p136, %s137, %s138
      %p142 = pneg %p136
      %p143 = scmp.eq.s32.totalorder %s17, 3
      %p144 = por %p142, %p143
      %p145 = scmp.ne.s32.totalorder %s137, %s140
      %p146 = scmp.eq.s32.totalorder %s17, 0
      %p147 = por %p145, %p146
      %p148 = scmp.ne.s32.totalorder %s137, %s140
      %p149 = scmp.eq.s32.totalorder %s22, 3
      %p150 = por %p148, %p149
      %p151 = scmp.ne.s32.totalorder %s140, %s141
      %p152 = scmp.eq.s32.totalorder %s22, 0
      %p153 = por %p151, %p152
      %p154 = scmp.ne.s32.totalorder %s140, %s141
      %p155 = scmp.eq.s32.totalorder %s23, 3
      %p156 = por %p154, %p155
      %p158 = scmp.ne.s32.totalorder %s141, %s157
      %p159 = scmp.eq.s32.totalorder %s23, 0
      %p160 = por %p158, %p159
      %p161 = scmp.le.s32.totalorder 1, %s17
      %p162 = scmp.lt.s32.totalorder %s17, 5
      %p163 = pnand %p161, %p162
      %p164 = pneg %p163
      // Predicated region
      $region9: #{tpu_custom_call.1} parent=5 // pred_check
        _
      $region10: #{tpu_custom_call.1} parent=5 // pred_check_branch
        %166 = sbr.rel (%p163) target = $region12
      $region11: #{tpu_custom_call.1} parent=5 // pred_region
        %s167 = ssub.s32 %s17, 1
        // Predicated region
        $region13: #{tpu_custom_call.1} parent=11 // pred_check
          %p168 = pneg %p64
        $region14: #{tpu_custom_call.1} parent=11 // pred_check_branch
          %170 = sbr.rel (%p168) target = $region16
        $region15: #{tpu_custom_call.1} parent=11 // pred_region
          _
        $region16: #{tpu_custom_call.1} parent=11 // pred_fallthru
          _
        // Predicated region
        $region17: #{tpu_custom_call.1} parent=11 // pred_check
          %p171 = pneg %p85
        $region18: #{tpu_custom_call.1} parent=11 // pred_check_branch
          %173 = sbr.rel (%p171) target = $region20
        $region19: #{tpu_custom_call.1} parent=11 // pred_region
          _
        $region20: #{tpu_custom_call.1} parent=11 // pred_fallthru
          _
        // Predicated region
        $region21: #{tpu_custom_call.1} parent=11 // pred_check
          %p174 = pneg %p106
        $region22: #{tpu_custom_call.1} parent=11 // pred_check_branch
          %176 = sbr.rel (%p174) target = $region24
        $region23: #{tpu_custom_call.1} parent=11 // pred_region
          _
        $region24: #{tpu_custom_call.1} parent=11 // pred_fallthru
          _
        // Predicated region
        $region25: #{tpu_custom_call.1} parent=11 // pred_check
          %p177 = pneg %p127
        $region26: #{tpu_custom_call.1} parent=11 // pred_check_branch
          %179 = sbr.rel (%p177) target = $region28
        $region27: #{tpu_custom_call.1} parent=11 // pred_region
          _
        $region28: #{tpu_custom_call.1} parent=11 // pred_fallthru
          _
      $region12: #{tpu_custom_call.1} parent=5 // pred_fallthru
        _
      %p180 = scmp.lt.s32.totalorder %s17, 4
      // Predicated region
      $region29: #{tpu_custom_call.1} parent=5 // pred_check
        %p181 = pneg %p180
      $region30: #{tpu_custom_call.1} parent=5 // pred_check_branch
        %183 = sbr.rel (%p181) target = $region32
      $region31: #{tpu_custom_call.1} parent=5 // pred_region
        // Predicated region
        $region33: #{tpu_custom_call.1} parent=31 // pred_check
          %p184 = pneg %p37
        $region34: #{tpu_custom_call.1} parent=31 // pred_check_branch
          %186 = sbr.rel (%p184) target = $region36
        $region35: #{tpu_custom_call.1} parent=31 // pred_region
          %s187 = sand.u32 %s27, 1
          %s188 = scalar_lea.sflag [#allocation3], %s187
          %s189 = sand.u32 %s27, 1
          %s190 = smul.addr %s189, 512
          %s191 = scalar_lea.vmem [#allocation2], %s190
          %s193 = ssub.s32 8192, 8192
          %194 = vsyncadd %s188, %s193
          %s195 = smul.addr %s17, 64
          %s196 = smul.addr %s195, 128
          %s197 = scalar_lea.hbm %s0, %s196
          %s198 = sshll.u32 %s191, 4
          %s199 = int_to_ptr.vmem [resolvable:$true] %s198
          %204 = dma.hbm_to_vmem [thread:$0]  %s197, 8192, %s199, %s188, 256, 256, 16
        $region36: #{tpu_custom_call.1} parent=31 // pred_fallthru
          _
      $region32: #{tpu_custom_call.1} parent=5 // pred_fallthru
        _
      %p205 = scmp.le.s32.totalorder 1, %s17
      %p206 = scmp.lt.s32.totalorder %s17, 5
      %p207 = pnand %p205, %p206
      %p208 = pneg %p207
      // Predicated region
      $region37: #{tpu_custom_call.1} parent=5 // pred_check
        _
      $region38: #{tpu_custom_call.1} parent=5 // pred_check_branch
        %210 = sbr.rel (%p207) target = $region40
      $region39: #{tpu_custom_call.1} parent=5 // pred_region
        %s211 = ssub.s32 %s17, 1
        %s212 = sand.u32 %s30, 1
        %s213 = scalar_lea.sflag [#allocation3], %s212
        %s214 = sand.u32 %s30, 1
        %s215 = smul.addr %s214, 512
        %s216 = scalar_lea.vmem [#allocation2], %s215
        // Predicated region
        $region41: #{tpu_custom_call.1} parent=39 // pred_check
          %p217 = pneg %p43
        $region42: #{tpu_custom_call.1} parent=39 // pred_check_branch
          %219 = sbr.rel (%p217) target = $region44
        $region43: #{tpu_custom_call.1} parent=39 // pred_region
          %220 = dma.done %s213, 8192
        $region44: #{tpu_custom_call.1} parent=39 // pred_fallthru
          _
        %s221 = sand.u32 %s30, 1
        %s222 = scalar_lea.sflag [#allocation3], %s221
        %s223 = sand.u32 %s30, 1
        %s224 = smul.addr %s223, 512
        %s225 = scalar_lea.vmem [#allocation2], %s224
        %p226 = pneg %p43
        %p227 = pneg %p40
        %p228 = pneg %p64
        %p229 = pneg %p61
        %p230 = pneg %p85
        %p231 = pneg %p82
        %p232 = pneg %p106
        %p233 = pneg %p103
        %p234 = pneg %p127
        %p235 = pneg %p124
        %p236 = pneg %p153
        %p237 = pneg %p150
        %s238 = sand.u32 %s140, 1
        %s239 = scalar_lea.sflag [#allocation4], %s238
        %s240 = sand.u32 %s140, 1
        %s241 = smul.addr %s240, 512
        %s242 = scalar_lea.vmem [#allocation5], %s241
        %v243 = vld [vmem:[%s216] sm:$0xff]
        %v244 = vld [vmem:[%s216 + $0x8] sm:$0xff]
        %v245 = vld [vmem:[%s216 + $0x10] sm:$0xff]
        %v246 = vld [vmem:[%s216 + $0x18] sm:$0xff]
        %v247 = vld [vmem:[%s216 + $0x20] sm:$0xff]
        %v248 = vld [vmem:[%s216 + $0x28] sm:$0xff]
        %v249 = vld [vmem:[%s216 + $0x30] sm:$0xff]
        %v250 = vld [vmem:[%s216 + $0x38] sm:$0xff]
        %v251 = vld [vmem:[%s216 + $0x40] sm:$0xff]
        %v252 = vld [vmem:[%s216 + $0x48] sm:$0xff]
        %v253 = vld [vmem:[%s216 + $0x50] sm:$0xff]
        %v254 = vld [vmem:[%s216 + $0x58] sm:$0xff]
        %v255 = vld [vmem:[%s216 + $0x60] sm:$0xff]
        %v256 = vld [vmem:[%s216 + $0x68] sm:$0xff]
        %v257 = vld [vmem:[%s216 + $0x70] sm:$0xff]
        %v258 = vld [vmem:[%s216 + $0x78] sm:$0xff]
        %v259 = vld [vmem:[%s216 + $0x80] sm:$0xff]
        %v260 = vld [vmem:[%s216 + $0x88] sm:$0xff]
        %v261 = vld [vmem:[%s216 + $0x90] sm:$0xff]
        %v262 = vld [vmem:[%s216 + $0x98] sm:$0xff]
        %v263 = vld [vmem:[%s216 + $0xa0] sm:$0xff]
        %v264 = vld [vmem:[%s216 + $0xa8] sm:$0xff]
        %v265 = vld [vmem:[%s216 + $0xb0] sm:$0xff]
        %v266 = vld [vmem:[%s216 + $0xb8] sm:$0xff]
        %v267 = vld [vmem:[%s216 + $0xc0] sm:$0xff]
        %v268 = vld [vmem:[%s216 + $0xc8] sm:$0xff]
        %v269 = vld [vmem:[%s216 + $0xd0] sm:$0xff]
        %v270 = vld [vmem:[%s216 + $0xd8] sm:$0xff]
        %v271 = vld [vmem:[%s216 + $0xe0] sm:$0xff]
        %v272 = vld [vmem:[%s216 + $0xe8] sm:$0xff]
        %v273 = vld [vmem:[%s216 + $0xf0] sm:$0xff]
        %v274 = vld [vmem:[%s216 + $0xf8] sm:$0xff]
        %v275 = vld [vmem:[%s216 + $0x100] sm:$0xff]
        %v276 = vld [vmem:[%s216 + $0x108] sm:$0xff]
        %v277 = vld [vmem:[%s216 + $0x110] sm:$0xff]
        %v278 = vld [vmem:[%s216 + $0x118] sm:$0xff]
        %v279 = vld [vmem:[%s216 + $0x120] sm:$0xff]
        %v280 = vld [vmem:[%s216 + $0x128] sm:$0xff]
        %v281 = vld [vmem:[%s216 + $0x130] sm:$0xff]
        %v282 = vld [vmem:[%s216 + $0x138] sm:$0xff]
        %v283 = vld [vmem:[%s216 + $0x140] sm:$0xff]
        %v284 = vld [vmem:[%s216 + $0x148] sm:$0xff]
        %v285 = vld [vmem:[%s216 + $0x150] sm:$0xff]
        %v286 = vld [vmem:[%s216 + $0x158] sm:$0xff]
        %v287 = vld [vmem:[%s216 + $0x160] sm:$0xff]
        %v288 = vld [vmem:[%s216 + $0x168] sm:$0xff]
        %v289 = vld [vmem:[%s216 + $0x170] sm:$0xff]
        %v290 = vld [vmem:[%s216 + $0x178] sm:$0xff]
        %v291 = vld [vmem:[%s216 + $0x180] sm:$0xff]
        %v292 = vld [vmem:[%s216 + $0x188] sm:$0xff]
        %v293 = vld [vmem:[%s216 + $0x190] sm:$0xff]
        %v294 = vld [vmem:[%s216 + $0x198] sm:$0xff]
        %v295 = vld [vmem:[%s216 + $0x1a0] sm:$0xff]
        %v296 = vld [vmem:[%s216 + $0x1a8] sm:$0xff]
        %v297 = vld [vmem:[%s216 + $0x1b0] sm:$0xff]
        %v298 = vld [vmem:[%s216 + $0x1b8] sm:$0xff]
        %v299 = vld [vmem:[%s216 + $0x1c0] sm:$0xff]
        %v300 = vld [vmem:[%s216 + $0x1c8] sm:$0xff]
        %v301 = vld [vmem:[%s216 + $0x1d0] sm:$0xff]
        %v302 = vld [vmem:[%s216 + $0x1d8] sm:$0xff]
        %v303 = vld [vmem:[%s216 + $0x1e0] sm:$0xff]
        %v304 = vld [vmem:[%s216 + $0x1e8] sm:$0xff]
        %v305 = vld [vmem:[%s216 + $0x1f0] sm:$0xff]
        %v306 = vld [vmem:[%s216 + $0x1f8] sm:$0xff]
        %v307 = vld [vmem:[%s1] sm:$0xff]
        %v308 = vld [vmem:[%s1 + $0x8] sm:$0xff]
        %v309 = vld [vmem:[%s1 + $0x10] sm:$0xff]
        %v310 = vld [vmem:[%s1 + $0x18] sm:$0xff]
        %v311 = vld [vmem:[%s1 + $0x20] sm:$0xff]
        %v312 = vld [vmem:[%s1 + $0x28] sm:$0xff]
        %v313 = vld [vmem:[%s1 + $0x30] sm:$0xff]
        %v314 = vld [vmem:[%s1 + $0x38] sm:$0xff]
        %v315 = vld [vmem:[%s1 + $0x40] sm:$0xff]
        %v316 = vld [vmem:[%s1 + $0x48] sm:$0xff]
        %v317 = vld [vmem:[%s1 + $0x50] sm:$0xff]
        %v318 = vld [vmem:[%s1 + $0x58] sm:$0xff]
        %v319 = vld [vmem:[%s1 + $0x60] sm:$0xff]
        %v320 = vld [vmem:[%s1 + $0x68] sm:$0xff]
        %v321 = vld [vmem:[%s1 + $0x70] sm:$0xff]
        %v322 = vld [vmem:[%s1 + $0x78] sm:$0xff]
        %v323 = vld [vmem:[%s1 + $0x80] sm:$0xff]
        %v324 = vld [vmem:[%s1 + $0x88] sm:$0xff]
        %v325 = vld [vmem:[%s1 + $0x90] sm:$0xff]
        %v326 = vld [vmem:[%s1 + $0x98] sm:$0xff]
        %v327 = vld [vmem:[%s1 + $0xa0] sm:$0xff]
        %v328 = vld [vmem:[%s1 + $0xa8] sm:$0xff]
        %v329 = vld [vmem:[%s1 + $0xb0] sm:$0xff]
        %v330 = vld [vmem:[%s1 + $0xb8] sm:$0xff]
        %v331 = vld [vmem:[%s1 + $0xc0] sm:$0xff]
        %v332 = vld [vmem:[%s1 + $0xc8] sm:$0xff]
        %v333 = vld [vmem:[%s1 + $0xd0] sm:$0xff]
        %v334 = vld [vmem:[%s1 + $0xd8] sm:$0xff]
        %v335 = vld [vmem:[%s1 + $0xe0] sm:$0xff]
        %v336 = vld [vmem:[%s1 + $0xe8] sm:$0xff]
        %v337 = vld [vmem:[%s1 + $0xf0] sm:$0xff]
        %v338 = vld [vmem:[%s1 + $0xf8] sm:$0xff]
        %v339 = vld [vmem:[%s2] sm:$0x1]
        %v340 = vld [vmem:[%s3] sm:$0xff]
        %v341 = vld [vmem:[%s3 + $0x8] sm:$0xff]
        %v342 = vld [vmem:[%s3 + $0x10] sm:$0xff]
        %v343 = vld [vmem:[%s3 + $0x18] sm:$0xff]
        %v344 = vld [vmem:[%s4] sm:$0x3]
        %v345 = vadd.f32 %v243, %v244
        %346 = vadd.xlane.f32.xlu0 %v345
        %v347 = vpop.xlane.xlu0 %346
        %v348 = vadd.f32 %v245, %v246
        %349 = vadd.xlane.f32.xlu0 %v348
        %v350 = vpop.xlane.xlu0 %349
        %v351 = vadd.f32 %v247, %v248
        %352 = vadd.xlane.f32.xlu0 %v351
        %v353 = vpop.xlane.xlu0 %352
        %v354 = vadd.f32 %v249, %v250
        %355 = vadd.xlane.f32.xlu0 %v354
        %v356 = vpop.xlane.xlu0 %355
        %v357 = vadd.f32 %v251, %v252
        %358 = vadd.xlane.f32.xlu0 %v357
        %v359 = vpop.xlane.xlu0 %358
        %v360 = vadd.f32 %v253, %v254
        %361 = vadd.xlane.f32.xlu0 %v360
        %v362 = vpop.xlane.xlu0 %361
        %v363 = vadd.f32 %v255, %v256
        %364 = vadd.xlane.f32.xlu0 %v363
        %v365 = vpop.xlane.xlu0 %364
        %v366 = vadd.f32 %v257, %v258
        %367 = vadd.xlane.f32.xlu0 %v366
        %v368 = vpop.xlane.xlu0 %367
        %v369 = vadd.f32 %v259, %v260
        %370 = vadd.xlane.f32.xlu0 %v369
        %v371 = vpop.xlane.xlu0 %370
        %v372 = vadd.f32 %v261, %v262
        %373 = vadd.xlane.f32.xlu0 %v372
        %v374 = vpop.xlane.xlu0 %373
        %v375 = vadd.f32 %v263, %v264
        %376 = vadd.xlane.f32.xlu0 %v375
        %v377 = vpop.xlane.xlu0 %376
        %v378 = vadd.f32 %v265, %v266
        %379 = vadd.xlane.f32.xlu0 %v378
        %v380 = vpop.xlane.xlu0 %379
        %v381 = vadd.f32 %v267, %v268
        %382 = vadd.xlane.f32.xlu0 %v381
        %v383 = vpop.xlane.xlu0 %382
        %v384 = vadd.f32 %v269, %v270
        %385 = vadd.xlane.f32.xlu0 %v384
        %v386 = vpop.xlane.xlu0 %385
        %v387 = vadd.f32 %v271, %v272
        %388 = vadd.xlane.f32.xlu0 %v387
        %v389 = vpop.xlane.xlu0 %388
        %v390 = vadd.f32 %v273, %v274
        %391 = vadd.xlane.f32.xlu0 %v390
        %v392 = vpop.xlane.xlu0 %391
        %v393 = vadd.f32 %v275, %v276
        %394 = vadd.xlane.f32.xlu0 %v393
        %v395 = vpop.xlane.xlu0 %394
        %v396 = vadd.f32 %v277, %v278
        %397 = vadd.xlane.f32.xlu0 %v396
        %v398 = vpop.xlane.xlu0 %397
        %v399 = vadd.f32 %v279, %v280
        %400 = vadd.xlane.f32.xlu0 %v399
        %v401 = vpop.xlane.xlu0 %400
        %v402 = vadd.f32 %v281, %v282
        %403 = vadd.xlane.f32.xlu0 %v402
        %v404 = vpop.xlane.xlu0 %403
        %v405 = vadd.f32 %v283, %v284
        %406 = vadd.xlane.f32.xlu0 %v405
        %v407 = vpop.xlane.xlu0 %406
        %v408 = vadd.f32 %v285, %v286
        %409 = vadd.xlane.f32.xlu0 %v408
        %v410 = vpop.xlane.xlu0 %409
        %v411 = vadd.f32 %v287, %v288
        %412 = vadd.xlane.f32.xlu0 %v411
        %v413 = vpop.xlane.xlu0 %412
        %v414 = vadd.f32 %v289, %v290
        %415 = vadd.xlane.f32.xlu0 %v414
        %v416 = vpop.xlane.xlu0 %415
        %v417 = vadd.f32 %v291, %v292
        %418 = vadd.xlane.f32.xlu0 %v417
        %v419 = vpop.xlane.xlu0 %418
        %v420 = vadd.f32 %v293, %v294
        %421 = vadd.xlane.f32.xlu0 %v420
        %v422 = vpop.xlane.xlu0 %421
        %v423 = vadd.f32 %v295, %v296
        %424 = vadd.xlane.f32.xlu0 %v423
        %v425 = vpop.xlane.xlu0 %424
        %v426 = vadd.f32 %v297, %v298
        %427 = vadd.xlane.f32.xlu0 %v426
        %v428 = vpop.xlane.xlu0 %427
        %v429 = vadd.f32 %v299, %v300
        %430 = vadd.xlane.f32.xlu0 %v429
        %v431 = vpop.xlane.xlu0 %430
        %v432 = vadd.f32 %v301, %v302
        %433 = vadd.xlane.f32.xlu0 %v432
        %v434 = vpop.xlane.xlu0 %433
        %v435 = vadd.f32 %v303, %v304
        %436 = vadd.xlane.f32.xlu0 %v435
        %v437 = vpop.xlane.xlu0 %436
        %v438 = vadd.f32 %v305, %v306
        %439 = vadd.xlane.f32.xlu0 %v438
        %v440 = vpop.xlane.xlu0 %439
        %v441 = vmul.f32 %v347, 0.00390625
        %v442 = vmul.f32 %v350, 0.00390625
        %v443 = vmul.f32 %v353, 0.00390625
        %v444 = vmul.f32 %v356, 0.00390625
        %v445 = vmul.f32 %v359, 0.00390625
        %v446 = vmul.f32 %v362, 0.00390625
        %v447 = vmul.f32 %v365, 0.00390625
        %v448 = vmul.f32 %v368, 0.00390625
        %v449 = vmul.f32 %v371, 0.00390625
        %v450 = vmul.f32 %v374, 0.00390625
        %v451 = vmul.f32 %v377, 0.00390625
        %v452 = vmul.f32 %v380, 0.00390625
        %v453 = vmul.f32 %v383, 0.00390625
        %v454 = vmul.f32 %v386, 0.00390625
        %v455 = vmul.f32 %v389, 0.00390625
        %v456 = vmul.f32 %v392, 0.00390625
        %v457 = vmul.f32 %v395, 0.00390625
        %v458 = vmul.f32 %v398, 0.00390625
        %v459 = vmul.f32 %v401, 0.00390625
        %v460 = vmul.f32 %v404, 0.00390625
        %v461 = vmul.f32 %v407, 0.00390625
        %v462 = vmul.f32 %v410, 0.00390625
        %v463 = vmul.f32 %v413, 0.00390625
        %v464 = vmul.f32 %v416, 0.00390625
        %v465 = vmul.f32 %v419, 0.00390625
        %v466 = vmul.f32 %v422, 0.00390625
        %v467 = vmul.f32 %v425, 0.00390625
        %v468 = vmul.f32 %v428, 0.00390625
        %v469 = vmul.f32 %v431, 0.00390625
        %v470 = vmul.f32 %v434, 0.00390625
        %v471 = vmul.f32 %v437, 0.00390625
        %v472 = vmul.f32 %v440, 0.00390625
        %v505 = vlaneseq
        %v506 = vand.u32 %v505, 127
        %v507 = vlaneseq
        %v508 = vshrl.u32 %v507, 7
        %v509 = vsub.s32 %v506, %v508
        %v510 = vrot.slane %v441, %v509
        %v511 = vadd.s32 %v506, 4294967288
        %v512 = vlaneseq
        %v513 = vshrl.u32 %v512, 7
        %v514 = vsub.s32 %v511, %v513
        %v515 = vrot.slane %v442, %v514
        %vm516 = vcmask 130112
        %v517 = vsel %vm516, %v515, %v510
        %v518 = vadd.s32 %v506, 4294967280
        %v519 = vlaneseq
        %v520 = vshrl.u32 %v519, 7
        %v521 = vsub.s32 %v518, %v520
        %v522 = vrot.slane %v443, %v521
        %vm523 = vcmask 195712
        %v524 = vsel %vm523, %v522, %v517
        %v525 = vadd.s32 %v506, 4294967272
        %v526 = vlaneseq
        %v527 = vshrl.u32 %v526, 7
        %v528 = vsub.s32 %v525, %v527
        %v529 = vrot.slane %v444, %v528
        %vm530 = vcmask 261312
        %v531 = vsel %vm530, %v529, %v524
        %v532 = vadd.s32 %v506, 4294967264
        %v533 = vlaneseq
        %v534 = vshrl.u32 %v533, 7
        %v535 = vsub.s32 %v532, %v534
        %v536 = vrot.slane %v445, %v535
        %vm537 = vcmask 326912
        %v538 = vsel %vm537, %v536, %v531
        %v539 = vadd.s32 %v506, 4294967256
        %v540 = vlaneseq
        %v541 = vshrl.u32 %v540, 7
        %v542 = vsub.s32 %v539, %v541
        %v543 = vrot.slane %v446, %v542
        %vm544 = vcmask 392512
        %v545 = vsel %vm544, %v543, %v538
        %v546 = vadd.s32 %v506, 4294967248
        %v547 = vlaneseq
        %v548 = vshrl.u32 %v547, 7
        %v549 = vsub.s32 %v546, %v548
        %v550 = vrot.slane %v447, %v549
        %vm551 = vcmask 458112
        %v552 = vsel %vm551, %v550, %v545
        %v553 = vadd.s32 %v506, 4294967240
        %v554 = vlaneseq
        %v555 = vshrl.u32 %v554, 7
        %v556 = vsub.s32 %v553, %v555
        %v557 = vrot.slane %v448, %v556
        %vm558 = vcmask 523712
        %v559 = vsel %vm558, %v557, %v552
        %v560 = vadd.s32 %v506, 4294967232
        %v561 = vlaneseq
        %v562 = vshrl.u32 %v561, 7
        %v563 = vsub.s32 %v560, %v562
        %v564 = vrot.slane %v449, %v563
        %vm565 = vcmask 589312
        %v566 = vsel %vm565, %v564, %v559
        %v567 = vadd.s32 %v506, 4294967224
        %v568 = vlaneseq
        %v569 = vshrl.u32 %v568, 7
        %v570 = vsub.s32 %v567, %v569
        %v571 = vrot.slane %v450, %v570
        %vm572 = vcmask 654912
        %v573 = vsel %vm572, %v571, %v566
        %v574 = vadd.s32 %v506, 4294967216
        %v575 = vlaneseq
        %v576 = vshrl.u32 %v575, 7
        %v577 = vsub.s32 %v574, %v576
        %v578 = vrot.slane %v451, %v577
        %vm579 = vcmask 720512
        %v580 = vsel %vm579, %v578, %v573
        %v581 = vadd.s32 %v506, 4294967208
        %v582 = vlaneseq
        %v583 = vshrl.u32 %v582, 7
        %v584 = vsub.s32 %v581, %v583
        %v585 = vrot.slane %v452, %v584
        %vm586 = vcmask 786112
        %v587 = vsel %vm586, %v585, %v580
        %v588 = vadd.s32 %v506, 4294967200
        %v589 = vlaneseq
        %v590 = vshrl.u32 %v589, 7
        %v591 = vsub.s32 %v588, %v590
        %v592 = vrot.slane %v453, %v591
        %vm593 = vcmask 851712
        %v594 = vsel %vm593, %v592, %v587
        %v595 = vadd.s32 %v506, 4294967192
        %v596 = vlaneseq
        %v597 = vshrl.u32 %v596, 7
        %v598 = vsub.s32 %v595, %v597
        %v599 = vrot.slane %v454, %v598
        %vm600 = vcmask 917312
        %v601 = vsel %vm600, %v599, %v594
        %v602 = vadd.s32 %v506, 4294967184
        %v603 = vlaneseq
        %v604 = vshrl.u32 %v603, 7
        %v605 = vsub.s32 %v602, %v604
        %v606 = vrot.slane %v455, %v605
        %vm607 = vcmask 982912
        %v608 = vsel %vm607, %v606, %v601
        %v609 = vadd.s32 %v506, 4294967176
        %v610 = vlaneseq
        %v611 = vshrl.u32 %v610, 7
        %v612 = vsub.s32 %v609, %v611
        %v613 = vrot.slane %v456, %v612
        %vm614 = vcmask 1048512
        %v615 = vsel %vm614, %v613, %v608
        %v616 = vlaneseq
        %v617 = vshrl.u32 %v616, 7
        %v618 = vsub.s32 %v506, %v617
        %v619 = vrot.slane %v457, %v618
        %v620 = vlaneseq
        %v621 = vshrl.u32 %v620, 7
        %v622 = vsub.s32 %v511, %v621
        %v623 = vrot.slane %v458, %v622
        %v624 = vsel %vm516, %v623, %v619
        %v625 = vlaneseq
        %v626 = vshrl.u32 %v625, 7
        %v627 = vsub.s32 %v518, %v626
        %v628 = vrot.slane %v459, %v627
        %v629 = vsel %vm523, %v628, %v624
        %v630 = vlaneseq
        %v631 = vshrl.u32 %v630, 7
        %v632 = vsub.s32 %v525, %v631
        %v633 = vrot.slane %v460, %v632
        %v634 = vsel %vm530, %v633, %v629
        %v635 = vlaneseq
        %v636 = vshrl.u32 %v635, 7
        %v637 = vsub.s32 %v532, %v636
        %v638 = vrot.slane %v461, %v637
        %v639 = vsel %vm537, %v638, %v634
        %v640 = vlaneseq
        %v641 = vshrl.u32 %v640, 7
        %v642 = vsub.s32 %v539, %v641
        %v643 = vrot.slane %v462, %v642
        %v644 = vsel %vm544, %v643, %v639
        %v645 = vlaneseq
        %v646 = vshrl.u32 %v645, 7
        %v647 = vsub.s32 %v546, %v646
        %v648 = vrot.slane %v463, %v647
        %v649 = vsel %vm551, %v648, %v644
        %v650 = vlaneseq
        %v651 = vshrl.u32 %v650, 7
        %v652 = vsub.s32 %v553, %v651
        %v653 = vrot.slane %v464, %v652
        %v654 = vsel %vm558, %v653, %v649
        %v655 = vlaneseq
        %v656 = vshrl.u32 %v655, 7
        %v657 = vsub.s32 %v560, %v656
        %v658 = vrot.slane %v465, %v657
        %v659 = vsel %vm565, %v658, %v654
        %v660 = vlaneseq
        %v661 = vshrl.u32 %v660, 7
        %v662 = vsub.s32 %v567, %v661
        %v663 = vrot.slane %v466, %v662
        %v664 = vsel %vm572, %v663, %v659
        %v665 = vlaneseq
        %v666 = vshrl.u32 %v665, 7
        %v667 = vsub.s32 %v574, %v666
        %v668 = vrot.slane %v467, %v667
        %v669 = vsel %vm579, %v668, %v664
        %v670 = vlaneseq
        %v671 = vshrl.u32 %v670, 7
        %v672 = vsub.s32 %v581, %v671
        %v673 = vrot.slane %v468, %v672
        %v674 = vsel %vm586, %v673, %v669
        %v675 = vlaneseq
        %v676 = vshrl.u32 %v675, 7
        %v677 = vsub.s32 %v588, %v676
        %v678 = vrot.slane %v469, %v677
        %v679 = vsel %vm593, %v678, %v674
        %v680 = vlaneseq
        %v681 = vshrl.u32 %v680, 7
        %v682 = vsub.s32 %v595, %v681
        %v683 = vrot.slane %v470, %v682
        %v684 = vsel %vm600, %v683, %v679
        %v685 = vlaneseq
        %v686 = vshrl.u32 %v685, 7
        %v687 = vsub.s32 %v602, %v686
        %v688 = vrot.slane %v471, %v687
        %v689 = vsel %vm607, %v688, %v684
        %v690 = vlaneseq
        %v691 = vshrl.u32 %v690, 7
        %v692 = vsub.s32 %v609, %v691
        %v693 = vrot.slane %v472, %v692
        %v694 = vsel %vm614, %v693, %v689
        %697 = vmatprep.subr.mxu0 0.0
        %698 = vmatpush1.msra.mxu0 %v322
        %699 = vmatprep.subr.mxu0 0.0
        %700 = vmatpush1.msra.mxu0 %v321
        %701 = vmatprep.subr.mxu0 0.0
        %702 = vmatpush1.msra.mxu0 %v320
        %703 = vmatprep.subr.mxu0 0.0
        %704 = vmatpush1.msra.mxu0 %v319
        %705 = vmatprep.subr.mxu0 0.0
        %706 = vmatpush1.msra.mxu0 %v318
        %707 = vmatprep.subr.mxu0 0.0
        %708 = vmatpush1.msra.mxu0 %v317
        %709 = vmatprep.subr.mxu0 0.0
        %710 = vmatpush1.msra.mxu0 %v316
        %711 = vmatprep.subr.mxu0 0.0
        %712 = vmatpush1.msra.mxu0 %v315
        %713 = vmatprep.subr.mxu0 0.0
        %714 = vmatpush1.msra.mxu0 %v314
        %715 = vmatprep.subr.mxu0 0.0
        %716 = vmatpush1.msra.mxu0 %v313
        %717 = vmatprep.subr.mxu0 0.0
        %718 = vmatpush1.msra.mxu0 %v312
        %719 = vmatprep.subr.mxu0 0.0
        %720 = vmatpush1.msra.mxu0 %v311
        %721 = vmatprep.subr.mxu0 0.0
        %722 = vmatpush1.msra.mxu0 %v310
        %723 = vmatprep.subr.mxu0 0.0
        %724 = vmatpush1.msra.mxu0 %v309
        %725 = vmatprep.subr.mxu0 0.0
        %726 = vmatpush1.msra.mxu0 %v308
        %727 = vmatprep.subr.mxu0 0.0
        %728 = vmatpush1.msra.mxu0 %v307
        %729 = vmatprep.subr.mxu0 0.0
        %730 = vmatpush2.msra.mxu0 %v338
        %731 = vmatprep.subr.mxu0 0.0
        %732 = vmatpush2.msra.mxu0 %v337
        %733 = vmatprep.subr.mxu0 0.0
        %734 = vmatpush2.msra.mxu0 %v336
        %735 = vmatprep.subr.mxu0 0.0
        %736 = vmatpush2.msra.mxu0 %v335
        %737 = vmatprep.subr.mxu0 0.0
        %738 = vmatpush2.msra.mxu0 %v334
        %739 = vmatprep.subr.mxu0 0.0
        %740 = vmatpush2.msra.mxu0 %v333
        %741 = vmatprep.subr.mxu0 0.0
        %742 = vmatpush2.msra.mxu0 %v332
        %743 = vmatprep.subr.mxu0 0.0
        %744 = vmatpush2.msra.mxu0 %v331
        %745 = vmatprep.subr.mxu0 0.0
        %746 = vmatpush2.msra.mxu0 %v330
        %747 = vmatprep.subr.mxu0 0.0
        %748 = vmatpush2.msra.mxu0 %v329
        %749 = vmatprep.subr.mxu0 0.0
        %750 = vmatpush2.msra.mxu0 %v328
        %751 = vmatprep.subr.mxu0 0.0
        %752 = vmatpush2.msra.mxu0 %v327
        %753 = vmatprep.subr.mxu0 0.0
        %754 = vmatpush2.msra.mxu0 %v326
        %755 = vmatprep.subr.mxu0 0.0
        %756 = vmatpush2.msra.mxu0 %v325
        %757 = vmatprep.subr.mxu0 0.0
        %758 = vmatpush2.msra.mxu0 %v324
        %759 = vmatprep.subr.mxu0 0.0
        %760 = vmatpush2.msra.mxu0 %v323
        %761 = vmatprep.mubr.f32.mxu0 %v694
        %762 = vmatmul.mubr.f32.gmra.mxu0 %v615
        %v763 = vpop.f32.mrf.mxu0
        %v764 = vadd.f32 %v339, %v763
        %v765 = vpop.f32.mrf.mxu0
        %766 = vdwg.mxu0
        %v767 = vmax.f32 %v764, 0.0
        %v769 = vlaneseq
        %v770 = vshrl.u32 %v769, 7
        %v771 = vsub.s32 0, %v770
        %v772 = vrot.slane %v344, %v771
        %v773 = vlaneseq
        %v774 = vshrl.u32 %v773, 7
        %v775 = vsub.s32 1, %v774
        %v776 = vrot.slane %v344, %v775
        %vm779 = vcmask 130048
        %v781 = vsel %vm779, %v767, 0
        %783 = vmatprep.subr.mxu0 0.0
        %784 = vmatpush1.msra.mxu0 0.0
        %785 = vmatprep.subr.mxu0 0.0
        %786 = vmatpush1.msra.mxu0 0.0
        %787 = vmatprep.subr.mxu0 0.0
        %788 = vmatpush1.msra.mxu0 0.0
        %789 = vmatprep.subr.mxu0 0.0
        %790 = vmatpush1.msra.mxu0 0.0
        %791 = vmatprep.subr.mxu0 0.0
        %792 = vmatpush1.msra.mxu0 0.0
        %793 = vmatprep.subr.mxu0 0.0
        %794 = vmatpush1.msra.mxu0 0.0
        %795 = vmatprep.subr.mxu0 0.0
        %796 = vmatpush1.msra.mxu0 0.0
        %797 = vmatprep.subr.mxu0 0.0
        %798 = vmatpush1.msra.mxu0 0.0
        %799 = vmatprep.subr.mxu0 0.0
        %800 = vmatpush1.msra.mxu0 0.0
        %801 = vmatprep.subr.mxu0 0.0
        %802 = vmatpush1.msra.mxu0 0.0
        %803 = vmatprep.subr.mxu0 0.0
        %804 = vmatpush1.msra.mxu0 0.0
        %805 = vmatprep.subr.mxu0 0.0
        %806 = vmatpush1.msra.mxu0 0.0
        %807 = vmatprep.subr.mxu0 0.0
        %808 = vmatpush1.msra.mxu0 0.0
        %809 = vmatprep.subr.mxu0 0.0
        %810 = vmatpush1.msra.mxu0 0.0
        %811 = vmatprep.subr.mxu0 %v343
        %812 = vmatpush1.msra.mxu0 %v342
        %813 = vmatprep.subr.mxu0 %v341
        %814 = vmatpush1.msra.mxu0 %v340
        %815 = vmatprep.subr.mxu0 0.0
        %816 = vmatpush2.msra.mxu0 0.0
        %817 = vmatprep.subr.mxu0 0.0
        %818 = vmatpush2.msra.mxu0 0.0
        %819 = vmatprep.subr.mxu0 0.0
        %820 = vmatpush2.msra.mxu0 0.0
        %821 = vmatprep.subr.mxu0 0.0
        %822 = vmatpush2.msra.mxu0 0.0
        %823 = vmatprep.subr.mxu0 0.0
        %824 = vmatpush2.msra.mxu0 0.0
        %825 = vmatprep.subr.mxu0 0.0
        %826 = vmatpush2.msra.mxu0 0.0
        %827 = vmatprep.subr.mxu0 0.0
        %828 = vmatpush2.msra.mxu0 0.0
        %829 = vmatprep.subr.mxu0 0.0
        %830 = vmatpush2.msra.mxu0 0.0
        %831 = vmatprep.subr.mxu0 0.0
        %832 = vmatpush2.msra.mxu0 0.0
        %833 = vmatprep.subr.mxu0 0.0
        %834 = vmatpush2.msra.mxu0 0.0
        %835 = vmatprep.subr.mxu0 0.0
        %836 = vmatpush2.msra.mxu0 0.0
        %837 = vmatprep.subr.mxu0 0.0
        %838 = vmatpush2.msra.mxu0 0.0
        %839 = vmatprep.subr.mxu0 0.0
        %840 = vmatpush2.msra.mxu0 0.0
        %841 = vmatprep.subr.mxu0 0.0
        %842 = vmatpush2.msra.mxu0 0.0
        %843 = vmatprep.subr.mxu0 0.0
        %844 = vmatpush2.msra.mxu0 0.0
        %845 = vmatprep.subr.mxu0 0.0
        %846 = vmatpush2.msra.mxu0 0.0
        %847 = vmatprep.mubr.f32.mxu0 0.0
        %848 = vmatmul.mubr.f32.gmra.mxu0 %v781
        %v849 = vpop.f32.mrf.mxu0
        %v850 = vadd.f32 %v772, %v849
        %v851 = vpop.f32.mrf.mxu0
        %v852 = vadd.f32 %v776, %v851
        %853 = vdwg.mxu0
        %v854 = vxor.u32 %v850, 2147483648
        %v855 = vxor.u32 %v852, 2147483648
        %v856 = vmul.f32 %v854, 1.442695
        %v857 = vpow.pop %v856
        %v858 = vmul.f32 %v855, 1.442695
        %v859 = vpow.pop %v858
        %v860 = vadd.f32 %v857, 1.0
        %v861 = vadd.f32 %v859, 1.0
        %v862 = vrcp.pop %v860
        %v863 = vmul.f32 1.0, %v862
        %v864 = vrcp.pop %v861
        %v865 = vmul.f32 1.0, %v864
        %v866 = vlaneseq
        %v867 = vshrl.u32 %v866, 7
        %v868 = vsub.s32 0, %v867
        %v869 = vrot.slane %v863, %v868
        %871 = vbcast.lane.b32.xlu0 %v869, 256
        %v872 = vpop.permute.xlu0 %871
        %s874 = sor.u32 256, 8
        %875 = vbcast.lane.b32.xlu0 %v869, %s874
        %v876 = vpop.permute.xlu0 %875
        %s878 = sor.u32 256, 16
        %879 = vbcast.lane.b32.xlu0 %v869, %s878
        %v880 = vpop.permute.xlu0 %879
        %s882 = sor.u32 256, 24
        %883 = vbcast.lane.b32.xlu0 %v869, %s882
        %v884 = vpop.permute.xlu0 %883
        %s886 = sor.u32 256, 32
        %887 = vbcast.lane.b32.xlu0 %v869, %s886
        %v888 = vpop.permute.xlu0 %887
        %s890 = sor.u32 256, 40
        %891 = vbcast.lane.b32.xlu0 %v869, %s890
        %v892 = vpop.permute.xlu0 %891
        %s894 = sor.u32 256, 48
        %895 = vbcast.lane.b32.xlu0 %v869, %s894
        %v896 = vpop.permute.xlu0 %895
        %s898 = sor.u32 256, 56
        %899 = vbcast.lane.b32.xlu0 %v869, %s898
        %v900 = vpop.permute.xlu0 %899
        %s902 = sor.u32 256, 64
        %903 = vbcast.lane.b32.xlu0 %v869, %s902
        %v904 = vpop.permute.xlu0 %903
        %s906 = sor.u32 256, 72
        %907 = vbcast.lane.b32.xlu0 %v869, %s906
        %v908 = vpop.permute.xlu0 %907
        %s910 = sor.u32 256, 80
        %911 = vbcast.lane.b32.xlu0 %v869, %s910
        %v912 = vpop.permute.xlu0 %911
        %s914 = sor.u32 256, 88
        %915 = vbcast.lane.b32.xlu0 %v869, %s914
        %v916 = vpop.permute.xlu0 %915
        %s918 = sor.u32 256, 96
        %919 = vbcast.lane.b32.xlu0 %v869, %s918
        %v920 = vpop.permute.xlu0 %919
        %s922 = sor.u32 256, 104
        %923 = vbcast.lane.b32.xlu0 %v869, %s922
        %v924 = vpop.permute.xlu0 %923
        %s926 = sor.u32 256, 112
        %927 = vbcast.lane.b32.xlu0 %v869, %s926
        %v928 = vpop.permute.xlu0 %927
        %s930 = sor.u32 256, 120
        %931 = vbcast.lane.b32.xlu0 %v869, %s930
        %v932 = vpop.permute.xlu0 %931
        %v933 = vlaneseq
        %v934 = vshrl.u32 %v933, 7
        %v935 = vsub.s32 0, %v934
        %v936 = vrot.slane %v865, %v935
        %938 = vbcast.lane.b32.xlu0 %v936, 256
        %v939 = vpop.permute.xlu0 %938
        %s941 = sor.u32 256, 8
        %942 = vbcast.lane.b32.xlu0 %v936, %s941
        %v943 = vpop.permute.xlu0 %942
        %s945 = sor.u32 256, 16
        %946 = vbcast.lane.b32.xlu0 %v936, %s945
        %v947 = vpop.permute.xlu0 %946
        %s949 = sor.u32 256, 24
        %950 = vbcast.lane.b32.xlu0 %v936, %s949
        %v951 = vpop.permute.xlu0 %950
        %s953 = sor.u32 256, 32
        %954 = vbcast.lane.b32.xlu0 %v936, %s953
        %v955 = vpop.permute.xlu0 %954
        %s957 = sor.u32 256, 40
        %958 = vbcast.lane.b32.xlu0 %v936, %s957
        %v959 = vpop.permute.xlu0 %958
        %s961 = sor.u32 256, 48
        %962 = vbcast.lane.b32.xlu0 %v936, %s961
        %v963 = vpop.permute.xlu0 %962
        %s965 = sor.u32 256, 56
        %966 = vbcast.lane.b32.xlu0 %v936, %s965
        %v967 = vpop.permute.xlu0 %966
        %s969 = sor.u32 256, 64
        %970 = vbcast.lane.b32.xlu0 %v936, %s969
        %v971 = vpop.permute.xlu0 %970
        %s973 = sor.u32 256, 72
        %974 = vbcast.lane.b32.xlu0 %v936, %s973
        %v975 = vpop.permute.xlu0 %974
        %s977 = sor.u32 256, 80
        %978 = vbcast.lane.b32.xlu0 %v936, %s977
        %v979 = vpop.permute.xlu0 %978
        %s981 = sor.u32 256, 88
        %982 = vbcast.lane.b32.xlu0 %v936, %s981
        %v983 = vpop.permute.xlu0 %982
        %s985 = sor.u32 256, 96
        %986 = vbcast.lane.b32.xlu0 %v936, %s985
        %v987 = vpop.permute.xlu0 %986
        %s989 = sor.u32 256, 104
        %990 = vbcast.lane.b32.xlu0 %v936, %s989
        %v991 = vpop.permute.xlu0 %990
        %s993 = sor.u32 256, 112
        %994 = vbcast.lane.b32.xlu0 %v936, %s993
        %v995 = vpop.permute.xlu0 %994
        %s997 = sor.u32 256, 120
        %998 = vbcast.lane.b32.xlu0 %v936, %s997
        %v999 = vpop.permute.xlu0 %998
        %v1000 = vmul.f32 %v243, %v872
        %v1001 = vmul.f32 %v244, %v872
        %v1002 = vmul.f32 %v245, %v876
        %v1003 = vmul.f32 %v246, %v876
        %v1004 = vmul.f32 %v247, %v880
        %v1005 = vmul.f32 %v248, %v880
        %v1006 = vmul.f32 %v249, %v884
        %v1007 = vmul.f32 %v250, %v884
        %v1008 = vmul.f32 %v251, %v888
        %v1009 = vmul.f32 %v252, %v888
        %v1010 = vmul.f32 %v253, %v892
        %v1011 = vmul.f32 %v254, %v892
        %v1012 = vmul.f32 %v255, %v896
        %v1013 = vmul.f32 %v256, %v896
        %v1014 = vmul.f32 %v257, %v900
        %v1015 = vmul.f32 %v258, %v900
        %v1016 = vmul.f32 %v259, %v904
        %v1017 = vmul.f32 %v260, %v904
        %v1018 = vmul.f32 %v261, %v908
        %v1019 = vmul.f32 %v262, %v908
        %v1020 = vmul.f32 %v263, %v912
        %v1021 = vmul.f32 %v264, %v912
        %v1022 = vmul.f32 %v265, %v916
        %v1023 = vmul.f32 %v266, %v916
        %v1024 = vmul.f32 %v267, %v920
        %v1025 = vmul.f32 %v268, %v920
        %v1026 = vmul.f32 %v269, %v924
        %v1027 = vmul.f32 %v270, %v924
        %v1028 = vmul.f32 %v271, %v928
        %v1029 = vmul.f32 %v272, %v928
        %v1030 = vmul.f32 %v273, %v932
        %v1031 = vmul.f32 %v274, %v932
        %v1032 = vmul.f32 %v275, %v939
        %v1033 = vmul.f32 %v276, %v939
        %v1034 = vmul.f32 %v277, %v943
        %v1035 = vmul.f32 %v278, %v943
        %v1036 = vmul.f32 %v279, %v947
        %v1037 = vmul.f32 %v280, %v947
        %v1038 = vmul.f32 %v281, %v951
        %v1039 = vmul.f32 %v282, %v951
        %v1040 = vmul.f32 %v283, %v955
        %v1041 = vmul.f32 %v284, %v955
        %v1042 = vmul.f32 %v285, %v959
        %v1043 = vmul.f32 %v286, %v959
        %v1044 = vmul.f32 %v287, %v963
        %v1045 = vmul.f32 %v288, %v963
        %v1046 = vmul.f32 %v289, %v967
        %v1047 = vmul.f32 %v290, %v967
        %v1048 = vmul.f32 %v291, %v971
        %v1049 = vmul.f32 %v292, %v971
        %v1050 = vmul.f32 %v293, %v975
        %v1051 = vmul.f32 %v294, %v975
        %v1052 = vmul.f32 %v295, %v979
        %v1053 = vmul.f32 %v296, %v979
        %v1054 = vmul.f32 %v297, %v983
        %v1055 = vmul.f32 %v298, %v983
        %v1056 = vmul.f32 %v299, %v987
        %v1057 = vmul.f32 %v300, %v987
        %v1058 = vmul.f32 %v301, %v991
        %v1059 = vmul.f32 %v302, %v991
        %v1060 = vmul.f32 %v303, %v995
        %v1061 = vmul.f32 %v304, %v995
        %v1062 = vmul.f32 %v305, %v999
        %v1063 = vmul.f32 %v306, %v999
        %1064 = vst [vmem:[%s242] sm:$0xff] %v1000
        %1065 = vst [vmem:[%s242 + $0x8] sm:$0xff] %v1001
        %1066 = vst [vmem:[%s242 + $0x10] sm:$0xff] %v1002
        %1067 = vst [vmem:[%s242 + $0x18] sm:$0xff] %v1003
        %1068 = vst [vmem:[%s242 + $0x20] sm:$0xff] %v1004
        %1069 = vst [vmem:[%s242 + $0x28] sm:$0xff] %v1005
        %1070 = vst [vmem:[%s242 + $0x30] sm:$0xff] %v1006
        %1071 = vst [vmem:[%s242 + $0x38] sm:$0xff] %v1007
        %1072 = vst [vmem:[%s242 + $0x40] sm:$0xff] %v1008
        %1073 = vst [vmem:[%s242 + $0x48] sm:$0xff] %v1009
        %1074 = vst [vmem:[%s242 + $0x50] sm:$0xff] %v1010
        %1075 = vst [vmem:[%s242 + $0x58] sm:$0xff] %v1011
        %1076 = vst [vmem:[%s242 + $0x60] sm:$0xff] %v1012
        %1077 = vst [vmem:[%s242 + $0x68] sm:$0xff] %v1013
        %1078 = vst [vmem:[%s242 + $0x70] sm:$0xff] %v1014
        %1079 = vst [vmem:[%s242 + $0x78] sm:$0xff] %v1015
        %1080 = vst [vmem:[%s242 + $0x80] sm:$0xff] %v1016
        %1081 = vst [vmem:[%s242 + $0x88] sm:$0xff] %v1017
        %1082 = vst [vmem:[%s242 + $0x90] sm:$0xff] %v1018
        %1083 = vst [vmem:[%s242 + $0x98] sm:$0xff] %v1019
        %1084 = vst [vmem:[%s242 + $0xa0] sm:$0xff] %v1020
        %1085 = vst [vmem:[%s242 + $0xa8] sm:$0xff] %v1021
        %1086 = vst [vmem:[%s242 + $0xb0] sm:$0xff] %v1022
        %1087 = vst [vmem:[%s242 + $0xb8] sm:$0xff] %v1023
        %1088 = vst [vmem:[%s242 + $0xc0] sm:$0xff] %v1024
        %1089 = vst [vmem:[%s242 + $0xc8] sm:$0xff] %v1025
        %1090 = vst [vmem:[%s242 + $0xd0] sm:$0xff] %v1026
        %1091 = vst [vmem:[%s242 + $0xd8] sm:$0xff] %v1027
        %1092 = vst [vmem:[%s242 + $0xe0] sm:$0xff] %v1028
        %1093 = vst [vmem:[%s242 + $0xe8] sm:$0xff] %v1029
        %1094 = vst [vmem:[%s242 + $0xf0] sm:$0xff] %v1030
        %1095 = vst [vmem:[%s242 + $0xf8] sm:$0xff] %v1031
        %1096 = vst [vmem:[%s242 + $0x100] sm:$0xff] %v1032
        %1097 = vst [vmem:[%s242 + $0x108] sm:$0xff] %v1033
        %1098 = vst [vmem:[%s242 + $0x110] sm:$0xff] %v1034
        %1099 = vst [vmem:[%s242 + $0x118] sm:$0xff] %v1035
        %1100 = vst [vmem:[%s242 + $0x120] sm:$0xff] %v1036
        %1101 = vst [vmem:[%s242 + $0x128] sm:$0xff] %v1037
        %1102 = vst [vmem:[%s242 + $0x130] sm:$0xff] %v1038
        %1103 = vst [vmem:[%s242 + $0x138] sm:$0xff] %v1039
        %1104 = vst [vmem:[%s242 + $0x140] sm:$0xff] %v1040
        %1105 = vst [vmem:[%s242 + $0x148] sm:$0xff] %v1041
        %1106 = vst [vmem:[%s242 + $0x150] sm:$0xff] %v1042
        %1107 = vst [vmem:[%s242 + $0x158] sm:$0xff] %v1043
        %1108 = vst [vmem:[%s242 + $0x160] sm:$0xff] %v1044
        %1109 = vst [vmem:[%s242 + $0x168] sm:$0xff] %v1045
        %1110 = vst [vmem:[%s242 + $0x170] sm:$0xff] %v1046
        %1111 = vst [vmem:[%s242 + $0x178] sm:$0xff] %v1047
        %1112 = vst [vmem:[%s242 + $0x180] sm:$0xff] %v1048
        %1113 = vst [vmem:[%s242 + $0x188] sm:$0xff] %v1049
        %1114 = vst [vmem:[%s242 + $0x190] sm:$0xff] %v1050
        %1115 = vst [vmem:[%s242 + $0x198] sm:$0xff] %v1051
        %1116 = vst [vmem:[%s242 + $0x1a0] sm:$0xff] %v1052
        %1117 = vst [vmem:[%s242 + $0x1a8] sm:$0xff] %v1053
        %1118 = vst [vmem:[%s242 + $0x1b0] sm:$0xff] %v1054
        %1119 = vst [vmem:[%s242 + $0x1b8] sm:$0xff] %v1055
        %1120 = vst [vmem:[%s242 + $0x1c0] sm:$0xff] %v1056
        %1121 = vst [vmem:[%s242 + $0x1c8] sm:$0xff] %v1057
        %1122 = vst [vmem:[%s242 + $0x1d0] sm:$0xff] %v1058
        %1123 = vst [vmem:[%s242 + $0x1d8] sm:$0xff] %v1059
        %1124 = vst [vmem:[%s242 + $0x1e0] sm:$0xff] %v1060
        %1125 = vst [vmem:[%s242 + $0x1e8] sm:$0xff] %v1061
        %1126 = vst [vmem:[%s242 + $0x1f0] sm:$0xff] %v1062
        %1127 = vst [vmem:[%s242 + $0x1f8] sm:$0xff] %v1063
        %s1128 = sand.u32 %s140, 1
        %s1129 = scalar_lea.sflag [#allocation4], %s1128
        %s1130 = sand.u32 %s140, 1
        %s1131 = smul.addr %s1130, 512
        %s1132 = scalar_lea.vmem [#allocation5], %s1131
        // Predicated region
        $region45: #{tpu_custom_call.1} parent=39 // pred_check
          %p1133 = pneg %p150
        $region46: #{tpu_custom_call.1} parent=39 // pred_check_branch
          %1135 = sbr.rel (%p1133) target = $region48
        $region47: #{tpu_custom_call.1} parent=39 // pred_region
          %s1137 = ssub.s32 8192, 8192
          %1138 = vsyncadd %s1129, %s1137
          %s1139 = smul.addr %s22, 64
          %s1140 = smul.addr %s1139, 128
          %s1141 = scalar_lea.hbm %s5, %s1140
          %s1142 = sshll.u32 %s1132, 4
          %s1143 = int_to_ptr.vmem [resolvable:$true] %s1142
          %1148 = dma.vmem_to_hbm [thread:$0]  %s1143, 8192, %s1141, %s1129, 256, 256, 16
        $region48: #{tpu_custom_call.1} parent=39 // pred_fallthru
          _
      $region40: #{tpu_custom_call.1} parent=5 // pred_fallthru
        _
      %p1149 = scmp.le.s32.totalorder 2, %s17
      // Predicated region
      $region49: #{tpu_custom_call.1} parent=5 // pred_check
        %p1150 = pneg %p1149
      $region50: #{tpu_custom_call.1} parent=5 // pred_check_branch
        %1152 = sbr.rel (%p1150) target = $region52
      $region51: #{tpu_custom_call.1} parent=5 // pred_region
        %s1153 = ssub.s32 %s17, 2
        // Predicated region
        $region53: #{tpu_custom_call.1} parent=51 // pred_check
          %p1154 = pneg %p156
        $region54: #{tpu_custom_call.1} parent=51 // pred_check_branch
          %1156 = sbr.rel (%p1154) target = $region56
        $region55: #{tpu_custom_call.1} parent=51 // pred_region
          %s1157 = sand.u32 %s141, 1
          %s1158 = scalar_lea.sflag [#allocation4], %s1157
          %s1159 = sand.u32 %s141, 1
          %s1160 = smul.addr %s1159, 512
          %s1161 = scalar_lea.vmem [#allocation5], %s1160
          %1162 = dma.done %s1158, 8192
        $region56: #{tpu_custom_call.1} parent=51 // pred_fallthru
          _
      $region52: #{tpu_custom_call.1} parent=5 // pred_fallthru
        _
    $region6: #{tpu_custom_call.1} parent=1 // loop_footer
      %s21 = sadd.s32 1, %s17
    $region7: #{tpu_custom_call.1} parent=1 // loop_footer_branch
      %16 = sbr.rel target = $region3
    $region8: #{tpu_custom_call.1} parent=1 // loop_exit
      _
    %1163 = vsyncpa [#allocation3], 1
    %s1164 = scalar_lea.sflag [#allocation3], 1
    %1165 = vsyncpa %s1164, 1
    %1166 = vsyncpa [#allocation4], 1
    %s1167 = scalar_lea.sflag [#allocation4], 1
    %1168 = vsyncpa %s1167, 1

</llo_original>
